<compile_context>
chip_gen: v7x
topology: tpu7x:2x2x1
jax: 0.10.0
libtpu: 0.0.40
codegen_flags: <defaults>
</compile_context>

<pallas_src>
import jax
import jax.numpy as jnp
from jax.experimental import pallas as pl
from jax.experimental.pallas import tpu as pltpu


def _pick_hw_block(hw, max_c, itemsize):
    """Lane-dim block: multiple of 128 that divides HW, ~2 MiB per array block."""
    if hw % 128 != 0:
        return hw                      # e.g. 13*13=169: use the full (small) extent
    target_lanes = max(512, (2 << 20) // (itemsize * max_c))
    blk = min(hw, max(128, (target_lanes // 128) * 128))
    while hw % blk != 0:               # keep every block full -> unmasked stores
        blk -= 128
    return blk


def _make_fusion_kernel(nx, a_chans, use_weight, scale_x_by_w0):
    """Kernel body for static channel counts. a_chans[i] is the channel extent
    of the i-th addend's block (== nx for full adds, < nx for partial adds)."""
    num_a = len(a_chans)

    def kernel(*refs):
        base = 1 if use_weight else 0
        w_ref = refs[0] if use_weight else None
        x_ref = refs[base]
        a_refs = refs[base + 1: base + 1 + num_a]
        out_ref = refs[base + 1 + num_a]

        # Register accumulation (fp32): single full-tile, unmasked store for the
        # common equal-channel path.
        acc = x_ref[...].astype(jnp.float32)
        if use_weight and scale_x_by_w0:
            acc = acc * w_ref[0]

        partials = []
        for i, (a_ref, ca) in enumerate(zip(a_refs, a_chans)):
            a = a_ref[...].astype(jnp.float32)
            if use_weight:
                a = a * w_ref[i + 1]
            if ca == nx:
                acc = acc + a               # full-channel add, stays in registers
            else:                           # ca < nx: rare partial-channel fusion
                partials.append((a, ca))

        out_ref[...] = acc.astype(out_ref.dtype)

        # Partial-channel addends: masked update of the low channels only.
        for a, ca in partials:
            out_ref[:, :ca, :] = (
                out_ref[:, :ca, :].astype(jnp.float32) + a
            ).astype(out_ref.dtype)

    return kernel


def weighted_feature_fusion(x, outputs, layers, w=None, use_weight=False,
                            scale_x_by_w0=False):
    """Pallas implementation of WeightedFeatureFusion.forward (NCHW inputs).

    scale_x_by_w0: upstream pytorchyolo multiplies x by w[0] before the fusion
    loop when weight=True; the module spec here omits it, so default is False.
    """
    n = len(layers) + 1
    N, Cx, H, W = x.shape
    HW = H * W
    itemsize = x.dtype.itemsize

    # Reshape-only views: no transposes, no extra HBM round trips.
    x_r = x.reshape(N, Cx, HW)
    a_rs, a_cs = [], []
    for l in layers:
        a = outputs[l]
        na = a.shape[1]
        a_r = a.reshape(N, na, HW)
        if na > Cx:
            if Cx % 8 == 0:
                # BlockSpec reads only the first Cx channels: dead channels never DMA'd.
                a_cs.append(Cx)
            else:
                # Cx not sublane-aligned: slice once outside the kernel instead.
                a_r = a_r[:, :Cx, :]
                a_cs.append(Cx)
        else:
            a_cs.append(na)
        a_rs.append(a_r)

    hw_block = _pick_hw_block(HW, max([Cx] + a_cs), itemsize)
    grid = (N, HW // hw_block)
    idx_map = lambda b, h: (b, 0, h)

    in_specs, args = [], []
    if use_weight:
        # sigmoid(w) * (2/n): tiny (n,) op in plain JAX; scalars live in SMEM.
        w_scaled = (jax.nn.sigmoid(w) * (2.0 / n)).astype(jnp.float32)
        args.append(w_scaled)
        in_specs.append(pl.BlockSpec((n,), lambda b, h: (0,),
                                     memory_space=pltpu.MemorySpace.SMEM))
    args.append(x_r)
    in_specs.append(pl.BlockSpec((1, Cx, hw_block), idx_map))
    for a_r, ca in zip(a_rs, a_cs):
        args.append(a_r)
        in_specs.append(pl.BlockSpec((1, ca, hw_block), idx_map))
    out_spec = pl.BlockSpec((1, Cx, hw_block), idx_map)

    # Double-buffered working set + headroom; stays well inside v7x's 64 MiB VMEM.
    per_step = sum(c * hw_block for c in ([Cx] + a_cs + [Cx])) * itemsize
    vmem_limit = int(min(56 << 20, max(16 << 20, 2 * per_step + (4 << 20))))

    kernel = _make_fusion_kernel(Cx, a_cs, use_weight, scale_x_by_w0)
    # NOTE: input_output_aliases={<x index>: 0} would let the output reuse x's HBM
    # buffer (PyTorch-like in-place), but callers here may still read x afterwards,
    # so we keep a separate output to avoid forcing a defensive copy.
    out_r = pl.pallas_call(
        kernel,
        out_shape=jax.ShapeDtypeStruct((N, Cx, HW), x.dtype),
        grid=grid,
        in_specs=in_specs,
        out_specs=out_spec,
        compiler_params=pltpu.CompilerParams(
            dimension_semantics=("parallel", "parallel"),
            vmem_limit_bytes=vmem_limit),
    )(*args)

    return out_r.reshape(N, Cx, H, W)


def reference(x, outputs, layers, w=None, use_weight=False, scale_x_by_w0=False):
    """Plain-JAX transcription of the PyTorch forward, for verification."""
    n = len(layers) + 1
    ws = None
    if use_weight:
        ws = jax.nn.sigmoid(w) * (2.0 / n)
        if scale_x_by_w0:
            x = x * ws[0]
    nx = x.shape[1]
    for i in range(n - 1):
        a = outputs[layers[i]] * ws[i + 1] if use_weight else outputs[layers[i]]
        na = a.shape[1]
        if nx == na:
            x = x + a
        elif nx > na:
            x = x.at[:, :na].add(a)
        else:
            x = x + a[:, :nx]
    return x


if __name__ == "__main__":
    key = jax.random.PRNGKey(0)
    k = jax.random.split(key, 12)

    def check(x, outputs, layers, w, use_weight, scale_x_by_w0):
        out = weighted_feature_fusion(x, outputs, layers, w=w,
                                      use_weight=use_weight,
                                      scale_x_by_w0=scale_x_by_w0)
        out = jax.block_until_ready(out)
        ref = reference(x, outputs, layers, w=w, use_weight=use_weight,
                        scale_x_by_w0=scale_x_by_w0)
        assert out.shape == x.shape and out.dtype == x.dtype
        assert jnp.allclose(out, ref, atol=1e-5, rtol=1e-5)

    # Config A: exercises na == nx, na < nx (partial add), na > nx (truncated
    # addend with non-sublane-aligned nx -> wrapper slice path).
    N, Cx, H, W = 2, 4, 16, 16
    layers_a = [2, 3, 4]
    n_a = len(layers_a) + 1
    x_a = jax.random.normal(k[0], (N, Cx, H, W), jnp.float32)
    outs_a = [
        jax.random.normal(k[1], (N, 4, H, W), jnp.float32),   # not referenced
        jax.random.normal(k[2], (N, 4, H, W), jnp.float32),   # not referenced
        jax.random.normal(k[3], (N, 4, H, W), jnp.float32),   # na == nx
        jax.random.normal(k[4], (N, 2, H, W), jnp.float32),   # na <  nx (partial add)
        jax.random.normal(k[5], (N, 6, H, W), jnp.float32),   # na >  nx (truncate a)
    ]
    w_a = jax.random.normal(k[6], (n_a,), jnp.float32) * 0.5

    check(x_a, outs_a, layers_a, w_a, True, False)   # module spec (no x * w[0])
    check(x_a, outs_a, layers_a, w_a, True, True)    # upstream pytorchyolo variant
    check(x_a, outs_a, layers_a, None, False, False) # weight=False path

    # Config B: sublane-aligned nx=8; na > nx handled purely via BlockSpec
    # (dead channels never DMA'd), na < nx partial path with aligned nx.
    Cx_b = 8
    layers_b = [0, 1, 2]
    n_b = len(layers_b) + 1
    x_b = jax.random.normal(k[7], (N, Cx_b, H, W), jnp.float32)
    outs_b = [
        jax.random.normal(k[8], (N, 8, H, W), jnp.float32),    # na == nx
        jax.random.normal(k[9], (N, 4, H, W), jnp.float32),    # na <  nx
        jax.random.normal(k[10], (N, 16, H, W), jnp.float32),  # na >  nx
    ]
    w_b = jax.random.normal(k[11], (n_b,), jnp.float32) * 0.5
    check(x_b, outs_b, layers_b, w_b, True, False)
    check(x_b, outs_b, layers_b, w_b, True, True)

    print("KERNEL_OK")
</pallas_src>

<mosaic_0001>
module attributes {stable_mosaic.version = 11 : i64} {
  func.func @kernel(%arg0: i32, %arg1: i32, %arg2: memref<4xf32, #tpu.memory_space<smem>>, %arg3: memref<1x4x256xf32, #tpu.memory_space<vmem>>, %arg4: memref<1x4x256xf32, #tpu.memory_space<vmem>>, %arg5: memref<1x2x256xf32, #tpu.memory_space<vmem>>, %arg6: memref<1x4x256xf32, #tpu.memory_space<vmem>>, %arg7: memref<1x4x256xf32, #tpu.memory_space<vmem>>) attributes {dimension_semantics = [#tpu.dimension_semantics<parallel>, #tpu.dimension_semantics<parallel>], iteration_bounds = array<i64: 2, 1>, scalar_prefetch = 0 : i64, scratch_operands = 0 : i64, tpu.core_type = #tpu.core_type<tc>, window_params = [{transform_indices = @transform_0, window_bounds = array<i64: 4>}, {transform_indices = @transform_1, window_bounds = array<i64: 1, 4, 256>}, {transform_indices = @transform_2, window_bounds = array<i64: 1, 4, 256>}, {transform_indices = @transform_3, window_bounds = array<i64: 1, 2, 256>}, {transform_indices = @transform_4, window_bounds = array<i64: 1, 4, 256>}, {transform_indices = @transform_5, window_bounds = array<i64: 1, 4, 256>}]} {
    %c0 = arith.constant 0 : index
    %c0_0 = arith.constant 0 : index
    %c0_1 = arith.constant 0 : index
    %0 = vector.load %arg3[%c0, %c0_0, %c0_1] : memref<1x4x256xf32, #tpu.memory_space<vmem>>, vector<1x4x256xf32>
    %c0_2 = arith.constant 0 : index
    %c0_3 = arith.constant 0 : index
    %c0_4 = arith.constant 0 : index
    %1 = vector.load %arg4[%c0_2, %c0_3, %c0_4] : memref<1x4x256xf32, #tpu.memory_space<vmem>>, vector<1x4x256xf32>
    %c1 = arith.constant 1 : index
    %2 = memref.load %arg2[%c1] : memref<4xf32, #tpu.memory_space<smem>>
    %3 = vector.broadcast %2 : f32 to vector<1x4x256xf32>
    %4 = arith.mulf %1, %3 : vector<1x4x256xf32>
    %5 = arith.addf %0, %4 : vector<1x4x256xf32>
    %c0_5 = arith.constant 0 : index
    %c0_6 = arith.constant 0 : index
    %c0_7 = arith.constant 0 : index
    %6 = vector.load %arg5[%c0_5, %c0_6, %c0_7] : memref<1x2x256xf32, #tpu.memory_space<vmem>>, vector<1x2x256xf32>
    %c2 = arith.constant 2 : index
    %7 = memref.load %arg2[%c2] : memref<4xf32, #tpu.memory_space<smem>>
    %8 = vector.broadcast %7 : f32 to vector<1x2x256xf32>
    %9 = arith.mulf %6, %8 : vector<1x2x256xf32>
    %c0_8 = arith.constant 0 : index
    %c0_9 = arith.constant 0 : index
    %c0_10 = arith.constant 0 : index
    %10 = vector.load %arg6[%c0_8, %c0_9, %c0_10] : memref<1x4x256xf32, #tpu.memory_space<vmem>>, vector<1x4x256xf32>
    %c3 = arith.constant 3 : index
    %11 = memref.load %arg2[%c3] : memref<4xf32, #tpu.memory_space<smem>>
    %12 = vector.broadcast %11 : f32 to vector<1x4x256xf32>
    %13 = arith.mulf %10, %12 : vector<1x4x256xf32>
    %14 = arith.addf %5, %13 : vector<1x4x256xf32>
    %c0_11 = arith.constant 0 : index
    %c0_12 = arith.constant 0 : index
    %c0_13 = arith.constant 0 : index
    %15 = vector.load %arg7[%c0_11, %c0_12, %c0_13] : memref<1x4x256xf32, #tpu.memory_space<vmem>>, vector<1x4x256xf32>
    tpu.vector_store %arg7[%c0_11, %c0_12, %c0_13], %14 {strides = array<i32>} : memref<1x4x256xf32, #tpu.memory_space<vmem>>, vector<1x4x256xf32>,
    %c0_14 = arith.constant 0 : index
    %c0_15 = arith.constant 0 : index
    %c0_16 = arith.constant 0 : index
    %16 = vector.load %arg7[%c0_14, %c0_15, %c0_16] : memref<1x4x256xf32, #tpu.memory_space<vmem>>, vector<1x2x256xf32>
    %17 = arith.addf %16, %9 : vector<1x2x256xf32>
    %c0_17 = arith.constant 0 : index
    %c0_18 = arith.constant 0 : index
    %c0_19 = arith.constant 0 : index
    %18 = vector.load %arg7[%c0_17, %c0_18, %c0_19] : memref<1x4x256xf32, #tpu.memory_space<vmem>>, vector<1x2x256xf32>
    tpu.vector_store %arg7[%c0_17, %c0_18, %c0_19], %17 {strides = array<i32>} : memref<1x4x256xf32, #tpu.memory_space<vmem>>, vector<1x2x256xf32>,
    return
  }
  func.func @transform_0(%arg0: i32, %arg1: i32) -> i32 {
    %c0_i32 = arith.constant 0 : i32
    %c0_i32_0 = arith.constant 0 : i32
    return %c0_i32 : i32
  }
  func.func @transform_1(%arg0: i32, %arg1: i32) -> (i32, i32, i32) {
    %c0_i32 = arith.constant 0 : i32
    %c0_i32_0 = arith.constant 0 : i32
    return %arg0, %c0_i32, %arg1 : i32, i32, i32
  }
  func.func @transform_2(%arg0: i32, %arg1: i32) -> (i32, i32, i32) {
    %c0_i32 = arith.constant 0 : i32
    %c0_i32_0 = arith.constant 0 : i32
    return %arg0, %c0_i32, %arg1 : i32, i32, i32
  }
  func.func @transform_3(%arg0: i32, %arg1: i32) -> (i32, i32, i32) {
    %c0_i32 = arith.constant 0 : i32
    %c0_i32_0 = arith.constant 0 : i32
    return %arg0, %c0_i32, %arg1 : i32, i32, i32
  }
  func.func @transform_4(%arg0: i32, %arg1: i32) -> (i32, i32, i32) {
    %c0_i32 = arith.constant 0 : i32
    %c0_i32_0 = arith.constant 0 : i32
    return %arg0, %c0_i32, %arg1 : i32, i32, i32
  }
  func.func @transform_5(%arg0: i32, %arg1: i32) -> (i32, i32, i32) {
    %c0_i32 = arith.constant 0 : i32
    %c0_i32_0 = arith.constant 0 : i32
    return %arg0, %c0_i32, %arg1 : i32, i32, i32
  }
}

</mosaic_0001>

<llo_original>
// kernel: tpu_custom_call.1
$region0: #{tpu_custom_call.1}
  #allocation0 [shape = 'u32[]', space=smem, size = 0x4, offset = 0x4, fixed_abs, tag = 'smem constant byte address 0x4 - core index']
  #allocation1 [shape = 'u32[144,128]{1,0:T(1,128)}', space=vmem, size = 0x12000, scoped, tag = 'internal scratch']
  %s0 = inlined_call_operand.hbm [shape: f32[4], index: 0, kind: input, shape index: {}]
  %s1 = inlined_call_operand.hbm [shape: f32[2,4,256], index: 1, kind: input, shape index: {}]
  %s2 = inlined_call_operand.hbm [shape: f32[2,4,256], index: 2, kind: input, shape index: {}]
  %s3 = inlined_call_operand.vmem [shape: f32[2,2,256], index: 3, kind: input, shape index: {}]
  %s4 = inlined_call_operand.hbm [shape: f32[2,4,256], index: 4, kind: input, shape index: {}]
  %s5 = inlined_call_operand.hbm [shape: f32[2,4,256], index: 5, kind: output, shape index: {}]
  %s6 = sld [smem:[#allocation0]]
  $region69: #{tpu_custom_call.1} parent=0
    _
  %s8 = ssub.s32 1, %s6
  %s9 = scalar_select 0, %s8, %s6
  $region1: #{tpu_custom_call.1} parent=0
    #allocation2 [shape = 'u8[512]{0}', space=smem, size = 0x200, scoped, tag = 'input window, operand 0, single buffered']
    #allocation3 [shape = 's32[2]{0}', space=sflag, size = 0x8, scoped, tag = 'scoped memory for tpu_custom_call.1']
    #allocation4 [shape = 's32[2]{0}', space=sflag, size = 0x8, scoped, tag = 'scoped memory for tpu_custom_call.1']
    #allocation5 [shape = 's32[2]{0}', space=sflag, size = 0x8, scoped, tag = 'scoped memory for tpu_custom_call.1']
    #allocation6 [shape = 'u8[8192]{0}', space=vmem, size = 0x2000, scoped, tag = 'input window, operand 1']
    #allocation7 [shape = 'u8[8192]{0}', space=vmem, size = 0x2000, scoped, tag = 'input window, operand 2']
    #allocation8 [shape = 's32[2]{0}', space=sflag, size = 0x8, scoped, tag = 'scoped memory for tpu_custom_call.1']
    #allocation9 [shape = 'u8[8192]{0}', space=vmem, size = 0x2000, scoped, tag = 'input window, operand 4']
    #allocation10 [shape = 'u8[8192]{0}', space=vmem, size = 0x2000, scoped, tag = 'output window, operand 0']
    %10 = vsyncpa [#allocation5], 0
    %11 = vsyncpa [#allocation3], 0
    %s12 = scalar_lea.sflag [#allocation3], 1
    %13 = vsyncpa %s12, 0
    %14 = vsyncpa [#allocation8], 0
    %s15 = scalar_lea.sflag [#allocation8], 1
    %16 = vsyncpa %s15, 0
    %17 = vsyncpa [#allocation4], 0
    %s18 = scalar_lea.sflag [#allocation4], 1
    %19 = vsyncpa %s18, 0
    loop: start=0, step=1, limit=4
    $region2: #{tpu_custom_call.1} parent=1 // loop_pre_header
      _
    $region3: #{tpu_custom_call.1} parent=1 // loop_header
      %s21 = sphi 0, %s25
      %p22 = scmp.ge.s32.totalorder %s21, 4
      %s28 = sphi 0, %s40
      %s29 = sphi 0, %s36
      %s30 = sphi 0, %s28
      %s31 = sphi 0, %s29
      %s32 = sphi 0, %s30
      %s33 = sphi 0, %s31
      %s41 = sphi 0, %s41
      %s43 = sphi 0, %s41
      %s44 = sphi 0, %s43
      %s58 = sphi 0, %s44
      %s66 = sphi 0, %s68
      %s69 = sphi 0, %s66
      %s70 = sphi 0, %s69
      %s86 = sphi 0, %s70
      %s94 = sphi 0, %s96
      %s97 = sphi 0, %s94
      %s98 = sphi 0, %s97
      %s114 = sphi 0, %s98
      %s122 = sphi 0, %s124
      %s125 = sphi 0, %s122
      %s126 = sphi 0, %s125
      %s142 = sphi 0, %s126
      %s150 = sphi 0, %s152
      %s153 = sphi 0, %s150
      %s154 = sphi 0, %s153
      %s170 = sphi 0, %s154
      %s178 = sphi 0, %s180
      %s181 = sphi 0, %s178
      %s182 = sphi 0, %s181
      %s198 = sphi 0, %s182
    $region4: #{tpu_custom_call.1} parent=1 // loop_header_branch
      %24 = sbr.rel (%p22) target = $region8
    $region5: #{tpu_custom_call.1} parent=1 // loop_body
      %s26 = ssub.s32 %s21, 1
      %s27 = ssub.s32 %s21, 2
      %s34 = sadd.s32 1, %s29
      %p35 = scmp.ge.s32.totalorder %s34, 1
      %s36 = scalar_select %p35, 0, %s34
      %s37 = sadd.s32 1, %s28
      %s38 = scalar_select %p35, %s37, %s28
      %p39 = scmp.ge.s32.totalorder %s38, 2
      %s40 = scalar_select %p39, 0, %s38
      %s42 = sadd.s32 %s41, 1
      %p45 = scmp.eq.s32.totalorder %s21, 1
      %p46 = scmp.ne.s32.totalorder %s41, %s43
      %p47 = scmp.eq.s32.totalorder %s21, 0
      %p48 = por %p46, %p47
      %p49 = scmp.ne.s32.totalorder %s41, %s43
      %p50 = scmp.eq.s32.totalorder %s26, 1
      %p51 = por %p49, %p50
      %p52 = scmp.ne.s32.totalorder %s43, %s44
      %p53 = scmp.eq.s32.totalorder %s26, 0
      %p54 = por %p52, %p53
      %p55 = scmp.ne.s32.totalorder %s43, %s44
      %p56 = scmp.eq.s32.totalorder %s27, 1
      %p57 = por %p55, %p56
      %p59 = scmp.ne.s32.totalorder %s44, %s58
      %p60 = scmp.eq.s32.totalorder %s27, 0
      %p61 = por %p59, %p60
      %s62 = ssub.s32 %s28, %s40
      %s63 = ssub.s32 %s29, %s36
      %s64 = sor.u32 %s62, %s63
      %p65 = scmp.eq.s32.totalorder %s64, 0
      %s67 = sadd.s32 %s66, 1
      %s68 = scalar_select %p65, %s66, %s67
      %p71 = pneg %p65
      %p72 = scmp.eq.s32.totalorder %s21, 1
      %p73 = por %p71, %p72
      %p74 = scmp.ne.s32.totalorder %s66, %s69
      %p75 = scmp.eq.s32.totalorder %s21, 0
      %p76 = por %p74, %p75
      %p77 = scmp.ne.s32.totalorder %s66, %s69
      %p78 = scmp.eq.s32.totalorder %s26, 1
      %p79 = por %p77, %p78
      %p80 = scmp.ne.s32.totalorder %s69, %s70
      %p81 = scmp.eq.s32.totalorder %s26, 0
      %p82 = por %p80, %p81
      %p83 = scmp.ne.s32.totalorder %s69, %s70
      %p84 = scmp.eq.s32.totalorder %s27, 1
      %p85 = por %p83, %p84
      %p87 = scmp.ne.s32.totalorder %s70, %s86
      %p88 = scmp.eq.s32.totalorder %s27, 0
      %p89 = por %p87, %p88
      %s90 = ssub.s32 %s28, %s40
      %s91 = ssub.s32 %s29, %s36
      %s92 = sor.u32 %s90, %s91
      %p93 = scmp.eq.s32.totalorder %s92, 0
      %s95 = sadd.s32 %s94, 1
      %s96 = scalar_select %p93, %s94, %s95
      %p99 = pneg %p93
      %p100 = scmp.eq.s32.totalorder %s21, 1
      %p101 = por %p99, %p100
      %p102 = scmp.ne.s32.totalorder %s94, %s97
      %p103 = scmp.eq.s32.totalorder %s21, 0
      %p104 = por %p102, %p103
      %p105 = scmp.ne.s32.totalorder %s94, %s97
      %p106 = scmp.eq.s32.totalorder %s26, 1
      %p107 = por %p105, %p106
      %p108 = scmp.ne.s32.totalorder %s97, %s98
      %p109 = scmp.eq.s32.totalorder %s26, 0
      %p110 = por %p108, %p109
      %p111 = scmp.ne.s32.totalorder %s97, %s98
      %p112 = scmp.eq.s32.totalorder %s27, 1
      %p113 = por %p111, %p112
      %p115 = scmp.ne.s32.totalorder %s98, %s114
      %p116 = scmp.eq.s32.totalorder %s27, 0
      %p117 = por %p115, %p116
      %s118 = ssub.s32 %s28, %s40
      %s119 = ssub.s32 %s29, %s36
      %s120 = sor.u32 %s118, %s119
      %p121 = scmp.eq.s32.totalorder %s120, 0
      %s123 = sadd.s32 %s122, 1
      %s124 = scalar_select %p121, %s122, %s123
      %p127 = pneg %p121
      %p128 = scmp.eq.s32.totalorder %s21, 1
      %p129 = por %p127, %p128
      %p130 = scmp.ne.s32.totalorder %s122, %s125
      %p131 = scmp.eq.s32.totalorder %s21, 0
      %p132 = por %p130, %p131
      %p133 = scmp.ne.s32.totalorder %s122, %s125
      %p134 = scmp.eq.s32.totalorder %s26, 1
      %p135 = por %p133, %p134
      %p136 = scmp.ne.s32.totalorder %s125, %s126
      %p137 = scmp.eq.s32.totalorder %s26, 0
      %p138 = por %p136, %p137
      %p139 = scmp.ne.s32.totalorder %s125, %s126
      %p140 = scmp.eq.s32.totalorder %s27, 1
      %p141 = por %p139, %p140
      %p143 = scmp.ne.s32.totalorder %s126, %s142
      %p144 = scmp.eq.s32.totalorder %s27, 0
      %p145 = por %p143, %p144
      %s146 = ssub.s32 %s28, %s40
      %s147 = ssub.s32 %s29, %s36
      %s148 = sor.u32 %s146, %s147
      %p149 = scmp.eq.s32.totalorder %s148, 0
      %s151 = sadd.s32 %s150, 1
      %s152 = scalar_select %p149, %s150, %s151
      %p155 = pneg %p149
      %p156 = scmp.eq.s32.totalorder %s21, 1
      %p157 = por %p155, %p156
      %p158 = scmp.ne.s32.totalorder %s150, %s153
      %p159 = scmp.eq.s32.totalorder %s21, 0
      %p160 = por %p158, %p159
      %p161 = scmp.ne.s32.totalorder %s150, %s153
      %p162 = scmp.eq.s32.totalorder %s26, 1
      %p163 = por %p161, %p162
      %p164 = scmp.ne.s32.totalorder %s153, %s154
      %p165 = scmp.eq.s32.totalorder %s26, 0
      %p166 = por %p164, %p165
      %p167 = scmp.ne.s32.totalorder %s153, %s154
      %p168 = scmp.eq.s32.totalorder %s27, 1
      %p169 = por %p167, %p168
      %p171 = scmp.ne.s32.totalorder %s154, %s170
      %p172 = scmp.eq.s32.totalorder %s27, 0
      %p173 = por %p171, %p172
      %s174 = ssub.s32 %s28, %s40
      %s175 = ssub.s32 %s29, %s36
      %s176 = sor.u32 %s174, %s175
      %p177 = scmp.eq.s32.totalorder %s176, 0
      %s179 = sadd.s32 %s178, 1
      %s180 = scalar_select %p177, %s178, %s179
      %p183 = pneg %p177
      %p184 = scmp.eq.s32.totalorder %s21, 1
      %p185 = por %p183, %p184
      %p186 = scmp.ne.s32.totalorder %s178, %s181
      %p187 = scmp.eq.s32.totalorder %s21, 0
      %p188 = por %p186, %p187
      %p189 = scmp.ne.s32.totalorder %s178, %s181
      %p190 = scmp.eq.s32.totalorder %s26, 1
      %p191 = por %p189, %p190
      %p192 = scmp.ne.s32.totalorder %s181, %s182
      %p193 = scmp.eq.s32.totalorder %s26, 0
      %p194 = por %p192, %p193
      %p195 = scmp.ne.s32.totalorder %s181, %s182
      %p196 = scmp.eq.s32.totalorder %s27, 1
      %p197 = por %p195, %p196
      %p199 = scmp.ne.s32.totalorder %s182, %s198
      %p200 = scmp.eq.s32.totalorder %s27, 0
      %p201 = por %p199, %p200
      %p202 = scmp.le.s32.totalorder 1, %s21
      %p203 = scmp.lt.s32.totalorder %s21, 3
      %p204 = pnand %p202, %p203
      %p205 = pneg %p204
      // Predicated region
      $region9: #{tpu_custom_call.1} parent=5 // pred_check
        _
      $region10: #{tpu_custom_call.1} parent=5 // pred_check_branch
        %207 = sbr.rel (%p204) target = $region12
      $region11: #{tpu_custom_call.1} parent=5 // pred_region
        %s208 = ssub.s32 %s21, 1
        // Predicated region
        $region13: #{tpu_custom_call.1} parent=11 // pred_check
          %p209 = pneg %p54
        $region14: #{tpu_custom_call.1} parent=11 // pred_check_branch
          %211 = sbr.rel (%p209) target = $region16
        $region15: #{tpu_custom_call.1} parent=11 // pred_region
          %s213 = ssub.s32 16, 16
          %214 = vsyncadd [#allocation5], %s213
          %217 = dma.hbm_to_smem %s0, 16, [#allocation2], [#allocation5]
        $region16: #{tpu_custom_call.1} parent=11 // pred_fallthru
          _
      $region12: #{tpu_custom_call.1} parent=5 // pred_fallthru
        _
      %p218 = scmp.lt.s32.totalorder %s21, 2
      // Predicated region
      $region17: #{tpu_custom_call.1} parent=5 // pred_check
        %p219 = pneg %p218
      $region18: #{tpu_custom_call.1} parent=5 // pred_check_branch
        %221 = sbr.rel (%p219) target = $region20
      $region19: #{tpu_custom_call.1} parent=5 // pred_region
        // Predicated region
        $region21: #{tpu_custom_call.1} parent=19 // pred_check
          %p222 = pneg %p76
        $region22: #{tpu_custom_call.1} parent=19 // pred_check_branch
          %224 = sbr.rel (%p222) target = $region24
        $region23: #{tpu_custom_call.1} parent=19 // pred_region
          %s225 = sand.u32 %s66, 1
          %s226 = scalar_lea.sflag [#allocation3], %s225
          %s227 = sand.u32 %s66, 1
          %s228 = smul.addr %s227, 8
          %s229 = scalar_lea.vmem [#allocation6], %s228
          %s230 = smul.u32 2, %s29
          %s232 = ssub.s32 128, 128
          %233 = vsyncadd %s226, %s232
          %s234 = smul.addr %s28, 2
          %s235 = sadd.s32 %s230, %s234
          %s236 = smul.addr %s235, 64
          %s237 = scalar_lea.hbm %s1, %s236
          %s239 = sshll.u32 %s229, 4
          %s240 = int_to_ptr.vmem [resolvable:$true] %s239
          %242 = dma.hbm_to_vmem [thread:$0]  %s237, 128, %s240, %s226
        $region24: #{tpu_custom_call.1} parent=19 // pred_fallthru
          _
        // Predicated region
        $region25: #{tpu_custom_call.1} parent=19 // pred_check
          %p243 = pneg %p104
        $region26: #{tpu_custom_call.1} parent=19 // pred_check_branch
          %245 = sbr.rel (%p243) target = $region28
        $region27: #{tpu_custom_call.1} parent=19 // pred_region
          %s246 = sand.u32 %s21, 1
          %s247 = scalar_lea.sflag [#allocation8], %s246
          %s248 = sand.u32 %s94, 1
          %s249 = smul.addr %s248, 8
          %s250 = scalar_lea.vmem [#allocation7], %s249
          %s251 = smul.u32 2, %s29
          %s253 = ssub.s32 128, 128
          %254 = vsyncadd %s247, %s253
          %s255 = smul.addr %s28, 2
          %s256 = sadd.s32 %s251, %s255
          %s257 = smul.addr %s256, 64
          %s258 = scalar_lea.hbm %s2, %s257
          %s260 = sshll.u32 %s250, 4
          %s261 = int_to_ptr.vmem [resolvable:$true] %s260
          %263 = dma.hbm_to_vmem [thread:$0]  %s258, 128, %s261, %s247
        $region28: #{tpu_custom_call.1} parent=19 // pred_fallthru
          _
        // Predicated region
        $region29: #{tpu_custom_call.1} parent=19 // pred_check
          %p264 = pneg %p132
        $region30: #{tpu_custom_call.1} parent=19 // pred_check_branch
          %266 = sbr.rel (%p264) target = $region32
        $region31: #{tpu_custom_call.1} parent=19 // pred_region
          %s267 = smul.u32 2, %s29
          %p268 = scmp.lt.s32.totalorder %s28, 1
          %s269 = scalar_select %p268, %s28, 1
          %p270 = scmp.lt.s32.totalorder %s267, 1
          %s271 = scalar_select %p270, %s267, 1
          %s272 = smul.addr %s269, 2
          %s273 = sadd.s32 %s271, %s272
          %s274 = smul.addr %s273, 2
          %s275 = scalar_lea.vmem %s3, %s274
          %s276 = smul.u32 2, %s29
        $region32: #{tpu_custom_call.1} parent=19 // pred_fallthru
          _
        // Predicated region
        $region33: #{tpu_custom_call.1} parent=19 // pred_check
          %p277 = pneg %p160
        $region34: #{tpu_custom_call.1} parent=19 // pred_check_branch
          %279 = sbr.rel (%p277) target = $region36
        $region35: #{tpu_custom_call.1} parent=19 // pred_region
          %s280 = sand.u32 %s21, 1
          %s281 = scalar_lea.sflag [#allocation8], %s280
          %s282 = sand.u32 %s150, 1
          %s283 = smul.addr %s282, 8
          %s284 = scalar_lea.vmem [#allocation9], %s283
          %s285 = smul.u32 2, %s29
          %s287 = ssub.s32 128, 128
          %288 = vsyncadd %s281, %s287
          %s289 = smul.addr %s28, 2
          %s290 = sadd.s32 %s285, %s289
          %s291 = smul.addr %s290, 64
          %s292 = scalar_lea.hbm %s4, %s291
          %s294 = sshll.u32 %s284, 4
          %s295 = int_to_ptr.vmem [resolvable:$true] %s294
          %297 = dma.hbm_to_vmem [thread:$0]  %s292, 128, %s295, %s281
        $region36: #{tpu_custom_call.1} parent=19 // pred_fallthru
          _
      $region20: #{tpu_custom_call.1} parent=5 // pred_fallthru
        _
      %p298 = scmp.le.s32.totalorder 1, %s21
      %p299 = scmp.lt.s32.totalorder %s21, 3
      %p300 = pnand %p298, %p299
      %p301 = pneg %p300
      // Predicated region
      $region37: #{tpu_custom_call.1} parent=5 // pred_check
        _
      $region38: #{tpu_custom_call.1} parent=5 // pred_check_branch
        %303 = sbr.rel (%p300) target = $region40
      $region39: #{tpu_custom_call.1} parent=5 // pred_region
        %s304 = ssub.s32 %s21, 1
        // Predicated region
        $region41: #{tpu_custom_call.1} parent=39 // pred_check
          %p305 = pneg %p54
        $region42: #{tpu_custom_call.1} parent=39 // pred_check_branch
          %307 = sbr.rel (%p305) target = $region44
        $region43: #{tpu_custom_call.1} parent=39 // pred_region
          %308 = dma.done [#allocation5], 16
        $region44: #{tpu_custom_call.1} parent=39 // pred_fallthru
          _
        %s309 = sand.u32 %s69, 1
        %s310 = scalar_lea.sflag [#allocation3], %s309
        %s311 = sand.u32 %s69, 1
        %s312 = smul.addr %s311, 8
        %s313 = scalar_lea.vmem [#allocation6], %s312
        // Predicated region
        $region45: #{tpu_custom_call.1} parent=39 // pred_check
          %p314 = pneg %p82
        $region46: #{tpu_custom_call.1} parent=39 // pred_check_branch
          %316 = sbr.rel (%p314) target = $region48
        $region47: #{tpu_custom_call.1} parent=39 // pred_region
          %317 = dma.done %s310, 128
        $region48: #{tpu_custom_call.1} parent=39 // pred_fallthru
          _
        %s318 = sand.u32 %s26, 1
        %s319 = scalar_lea.sflag [#allocation8], %s318
        %s320 = sand.u32 %s97, 1
        %s321 = smul.addr %s320, 8
        %s322 = scalar_lea.vmem [#allocation7], %s321
        // Predicated region
        $region49: #{tpu_custom_call.1} parent=39 // pred_check
          %p323 = pneg %p110
        $region50: #{tpu_custom_call.1} parent=39 // pred_check_branch
          %325 = sbr.rel (%p323) target = $region52
        $region51: #{tpu_custom_call.1} parent=39 // pred_region
          %326 = dma.done %s319, 128
        $region52: #{tpu_custom_call.1} parent=39 // pred_fallthru
          _
        %s327 = sand.u32 %s26, 1
        %s328 = scalar_lea.sflag [#allocation8], %s327
        %s329 = sand.u32 %s153, 1
        %s330 = smul.addr %s329, 8
        %s331 = scalar_lea.vmem [#allocation9], %s330
        // Predicated region
        $region53: #{tpu_custom_call.1} parent=39 // pred_check
          %p332 = pneg %p166
        $region54: #{tpu_custom_call.1} parent=39 // pred_check_branch
          %334 = sbr.rel (%p332) target = $region56
        $region55: #{tpu_custom_call.1} parent=39 // pred_region
          %335 = dma.done %s328, 128
        $region56: #{tpu_custom_call.1} parent=39 // pred_fallthru
          _
        %336 = sfence
        %p337 = pneg %p54
        %p338 = pneg %p51
        %s339 = sand.u32 %s69, 1
        %s340 = scalar_lea.sflag [#allocation3], %s339
        %s341 = sand.u32 %s69, 1
        %s342 = smul.addr %s341, 8
        %s343 = scalar_lea.vmem [#allocation6], %s342
        %p344 = pneg %p82
        %p345 = pneg %p79
        %s346 = sand.u32 %s26, 1
        %s347 = scalar_lea.sflag [#allocation8], %s346
        %s348 = sand.u32 %s97, 1
        %s349 = smul.addr %s348, 8
        %s350 = scalar_lea.vmem [#allocation7], %s349
        %p351 = pneg %p110
        %p352 = pneg %p107
        %s353 = smul.u32 2, %s31
        %p354 = scmp.lt.s32.totalorder %s30, 1
        %s355 = scalar_select %p354, %s30, 1
        %p356 = scmp.lt.s32.totalorder %s353, 1
        %s357 = scalar_select %p356, %s353, 1
        %s358 = smul.addr %s355, 2
        %s359 = sadd.s32 %s357, %s358
        %s360 = smul.addr %s359, 2
        %s361 = scalar_lea.vmem %s3, %s360
        %p362 = pneg %p138
        %p363 = pneg %p135
        %s364 = sand.u32 %s26, 1
        %s365 = scalar_lea.sflag [#allocation8], %s364
        %s366 = sand.u32 %s153, 1
        %s367 = smul.addr %s366, 8
        %s368 = scalar_lea.vmem [#allocation9], %s367
        %p369 = pneg %p166
        %p370 = pneg %p163
        %p371 = pneg %p194
        %p372 = pneg %p191
        %s373 = sand.u32 %s181, 1
        %s374 = scalar_lea.sflag [#allocation4], %s373
        %s375 = sand.u32 %s181, 1
        %s376 = smul.addr %s375, 8
        %s377 = scalar_lea.vmem [#allocation10], %s376
        %s378 = smul.u32 2, %s31
        %s379 = smul.u32 2, %s31
        %s380 = smul.u32 2, %s31
        %p381 = scmp.lt.s32.totalorder %s30, 1
        %s382 = scalar_select %p381, %s30, 1
        %p383 = scmp.lt.s32.totalorder %s380, 1
        %s384 = scalar_select %p383, %s380, 1
        %s385 = smul.addr %s382, 2
        %s386 = sadd.s32 %s384, %s385
        %s387 = smul.addr %s386, 2
        %s388 = scalar_lea.vmem %s3, %s387
        %s389 = smul.u32 2, %s31
        %s390 = smul.u32 2, %s31
        %s391 = smul.u32 2, %s31
        %v392 = vld [vmem:[%s313] sm:$0xff]
        %v393 = vld [vmem:[%s322] sm:$0xff]
        %s394 = sld [smem:[#allocation2 + $0x1]]
        %v395 = vstv %s394
        %v396 = vmul.f32 %v393, %v395
        %v397 = vadd.f32 %v392, %v396
        %v398 = vld [vmem:[%s388] sm:$0xf]
        %s399 = sld [smem:[#allocation2 + $0x2]]
        %v400 = vstv %s399
        %v401 = vmul.f32 %v398, %v400
        %v402 = vld [vmem:[%s331] sm:$0xff]
        %s403 = sld [smem:[#allocation2 + $0x3]]
        %v404 = vstv %s403
        %v405 = vmul.f32 %v402, %v404
        %v406 = vadd.f32 %v397, %v405
        %407 = vst [vmem:[%s377] sm:$0xff] %v406
        %v408 = vld [vmem:[%s377] sm:$0x33]
        %v411 = vunpack.c.l.s4 1983009808
        %v412 = vunpack.c.0.s8 %v411
        %v413 = vlaneseq
        %v414 = vshrl.u32 %v413, 7
        %v415 = vsub.s32 %v412, %v414
        %v416 = vrot.slane %v401, %v415
        %v418 = vadd.f32 %v408, %v416
        %419 = vst [vmem:[%s377] sm:$0x33] %v418
        %s420 = sand.u32 %s181, 1
        %s421 = scalar_lea.sflag [#allocation4], %s420
        %s422 = sand.u32 %s181, 1
        %s423 = smul.addr %s422, 8
        %s424 = scalar_lea.vmem [#allocation10], %s423
        // Predicated region
        $region57: #{tpu_custom_call.1} parent=39 // pred_check
          %p425 = pneg %p191
        $region58: #{tpu_custom_call.1} parent=39 // pred_check_branch
          %427 = sbr.rel (%p425) target = $region60
        $region59: #{tpu_custom_call.1} parent=39 // pred_region
          %s428 = smul.u32 2, %s31
          %s430 = ssub.s32 128, 128
          %431 = vsyncadd %s421, %s430
          %s432 = smul.addr %s30, 2
          %s433 = sadd.s32 %s428, %s432
          %s434 = smul.addr %s433, 64
          %s435 = scalar_lea.hbm %s5, %s434
          %s437 = sshll.u32 %s424, 4
          %s438 = int_to_ptr.vmem [resolvable:$true] %s437
          %440 = dma.vmem_to_hbm [thread:$0]  %s438, 128, %s435, %s421
        $region60: #{tpu_custom_call.1} parent=39 // pred_fallthru
          _
      $region40: #{tpu_custom_call.1} parent=5 // pred_fallthru
        _
      %p441 = scmp.le.s32.totalorder 2, %s21
      // Predicated region
      $region61: #{tpu_custom_call.1} parent=5 // pred_check
        %p442 = pneg %p441
      $region62: #{tpu_custom_call.1} parent=5 // pred_check_branch
        %444 = sbr.rel (%p442) target = $region64
      $region63: #{tpu_custom_call.1} parent=5 // pred_region
        %s445 = ssub.s32 %s21, 2
        // Predicated region
        $region65: #{tpu_custom_call.1} parent=63 // pred_check
          %p446 = pneg %p197
        $region66: #{tpu_custom_call.1} parent=63 // pred_check_branch
          %448 = sbr.rel (%p446) target = $region68
        $region67: #{tpu_custom_call.1} parent=63 // pred_region
          %s449 = sand.u32 %s182, 1
          %s450 = scalar_lea.sflag [#allocation4], %s449
          %s451 = sand.u32 %s182, 1
          %s452 = smul.addr %s451, 8
          %s453 = scalar_lea.vmem [#allocation10], %s452
          %454 = dma.done %s450, 128
        $region68: #{tpu_custom_call.1} parent=63 // pred_fallthru
          _
      $region64: #{tpu_custom_call.1} parent=5 // pred_fallthru
        _
    $region6: #{tpu_custom_call.1} parent=1 // loop_footer
      %s25 = sadd.s32 1, %s21
    $region7: #{tpu_custom_call.1} parent=1 // loop_footer_branch
      %20 = sbr.rel target = $region3
    $region8: #{tpu_custom_call.1} parent=1 // loop_exit
      _
    %455 = vsyncpa [#allocation3], 1
    %s456 = scalar_lea.sflag [#allocation3], 1
    %457 = vsyncpa %s456, 1
    %458 = vsyncpa [#allocation8], 1
    %s459 = scalar_lea.sflag [#allocation8], 1
    %460 = vsyncpa %s459, 1
    %461 = vsyncpa [#allocation4], 1
    %s462 = scalar_lea.sflag [#allocation4], 1
    %463 = vsyncpa %s462, 1
    %464 = vsyncpa [#allocation5], 1
    %s465 = scalar_lea.sflag [#allocation5], 1
    %466 = vsyncpa %s465, 1

</llo_original>
